<compile_context>
chip_gen: v6e
topology: v6e:2x2x1
jax: 0.10.0
libtpu: 0.0.40
codegen_flags: <defaults>
</compile_context>

<pallas_src>
import functools
import math

import numpy as np
import jax
import jax.numpy as jnp
from jax import lax
from jax.experimental import pallas as pl
from jax.experimental.pallas import tpu as pltpu


def _round_up(x, m):
    return ((x + m - 1) // m) * m


def _compiler_params(vmem_bytes_needed):
    kwargs = dict(dimension_semantics=("parallel",))  # token blocks are independent
    # Default scoped VMEM is only 16 MiB on v5e (32 MiB on v6e/v7x); raise it for
    # large tiles / resident tables, staying under v7x's 64 MiB physical VMEM.
    if vmem_bytes_needed > 12 * 1024 * 1024:
        kwargs["vmem_limit_bytes"] = int(min(vmem_bytes_needed * 1.5,
                                             60 * 1024 * 1024))
    return pltpu.CompilerParams(**kwargs)


# ---------------------------------------------------------------------------
# Path 1: table resident in VMEM, one-hot matmul row-select (small/medium vocab).
# ---------------------------------------------------------------------------
def _resident_embed_kernel(ids_ref, emb_ref, out_ref, *, scale):
    # ids_ref: (T, 1) int32 token ids for this block (VMEM).
    # emb_ref: (vocab, d_model) table, resident in VMEM (constant index_map).
    # out_ref: (T, d_model) output block.
    ids = ids_ref[...]                                   # (T, 1) int32
    t = ids.shape[0]
    vocab = emb_ref.shape[0]
    onehot = (ids == lax.broadcasted_iota(jnp.int32, (t, vocab), 1))
    onehot = onehot.astype(emb_ref.dtype)
    rows = jnp.dot(onehot, emb_ref[...], preferred_element_type=jnp.float32)
    out_ref[...] = (rows * scale).astype(out_ref.dtype)


# ---------------------------------------------------------------------------
# Path 2: table in HBM; deep-pipelined manual row-gather DMAs into VMEM staging.
# ---------------------------------------------------------------------------
def _gather_embed_kernel(ids_ref, emb_hbm, out_ref, stage_ref, copy_sems, *,
                         scale, block_tokens, nbuf):
    # ids_ref:   (padded_tokens,) int32, scalar-prefetched into SMEM.
    # emb_hbm:   (vocab, d_model) table left in HBM (memory_space=pl.ANY).
    # out_ref:   (T, d_model) output block in VMEM.
    # stage_ref: (T, d_model) VMEM staging buffer (table dtype).
    # copy_sems: (nbuf,) DMA semaphores -> up to nbuf outstanding row copies.
    base = pl.program_id(0) * block_tokens

    def row_copy(t):
        tok = ids_ref[base + t]
        return pltpu.make_async_copy(
            emb_hbm.at[pl.ds(tok, 1), :],
            stage_ref.at[pl.ds(t, 1), :],
            copy_sems.at[t % nbuf])

    # Prime the pipeline with the first `nbuf` rows (static unroll).
    n_prime = min(nbuf, block_tokens)
    for t in range(n_prime):
        row_copy(t).start()

    # Steady state: retire row t, immediately issue row t + nbuf on its slot.
    def steady(t, carry):
        row_copy(t).wait()
        row_copy(t + nbuf).start()
        return carry

    if block_tokens > nbuf:
        lax.fori_loop(0, block_tokens - nbuf, steady, 0)

    # Drain the remaining in-flight copies.
    def drain(t, carry):
        row_copy(t).wait()
        return carry

    lax.fori_loop(max(block_tokens - nbuf, 0), block_tokens, drain, 0)

    # One lane/sublane-dense scaled store of the whole (T, d_model) tile.
    out_ref[...] = (stage_ref[...].astype(jnp.float32) * scale).astype(out_ref.dtype)


# ---------------------------------------------------------------------------
# Wrapper: semantics of InputEmbeddings.forward  ->  emb_table[x] * sqrt(d_model)
# ---------------------------------------------------------------------------
def input_embeddings(x, emb_table, *, block_tokens=256, out_dtype=None,
                     force_path=None, nbuf=8,
                     resident_table_max_bytes=4 * 1024 * 1024):
    """x: (B, S) int token ids; emb_table: (vocab, d_model). Returns (B, S, d_model)."""
    assert force_path in (None, "resident", "gather")
    assert block_tokens % 8 == 0, "block_tokens must be a multiple of 8 (sublane tiling)"
    B, S = x.shape
    vocab, d_model = emb_table.shape
    if out_dtype is None:
        out_dtype = emb_table.dtype

    total = B * S
    # Tokens per grid step: multiple of 8 (sublane rule) and <= padded total.
    T = min(block_tokens, _round_up(total, 8))
    padded = _round_up(total, T)
    num_blocks = padded // T

    ids = x.reshape(total).astype(jnp.int32)
    if padded != total:
        ids = jnp.concatenate([ids, jnp.zeros((padded - total,), jnp.int32)])

    scale = math.sqrt(float(d_model))
    table_bytes = vocab * d_model * emb_table.dtype.itemsize
    out_block_bytes = T * d_model * np.dtype(out_dtype).itemsize

    if force_path is None:
        use_resident = (table_bytes <= resident_table_max_bytes) and (vocab <= 4096)
    else:
        use_resident = force_path == "resident"

    if use_resident:
        # Table is DMA'd into VMEM once and reused across every grid step.
        vmem_need = (table_bytes + T * vocab * 4           # one-hot temporary
                     + 2 * out_block_bytes + 2 * T * 4)
        out = pl.pallas_call(
            functools.partial(_resident_embed_kernel, scale=scale),
            out_shape=jax.ShapeDtypeStruct((padded, d_model), out_dtype),
            grid=(num_blocks,),
            in_specs=[
                pl.BlockSpec((T, 1), lambda i: (i, 0)),            # token ids
                pl.BlockSpec((vocab, d_model), lambda i: (0, 0)),  # resident table
            ],
            out_specs=pl.BlockSpec((T, d_model), lambda i: (i, 0)),
            compiler_params=_compiler_params(vmem_need),
        )(ids.reshape(padded, 1), emb_table)
    else:
        # Table stays in HBM; ids scalar-prefetched; rows gathered with up to
        # `nbuf` outstanding DMAs per step into a VMEM staging tile.
        stage_bytes = T * d_model * emb_table.dtype.itemsize
        vmem_need = stage_bytes + 2 * out_block_bytes
        out = pl.pallas_call(
            functools.partial(_gather_embed_kernel, scale=scale,
                              block_tokens=T, nbuf=nbuf),
            out_shape=jax.ShapeDtypeStruct((padded, d_model), out_dtype),
            grid_spec=pltpu.PrefetchScalarGridSpec(
                num_scalar_prefetch=1,
                grid=(num_blocks,),
                in_specs=[pl.BlockSpec(memory_space=pl.ANY)],       # table in HBM
                out_specs=pl.BlockSpec((T, d_model),
                                       lambda i, ids_sref: (i, 0)),
                scratch_shapes=[
                    pltpu.VMEM((T, d_model), emb_table.dtype),
                    pltpu.SemaphoreType.DMA((nbuf,)),
                ]),
            compiler_params=_compiler_params(vmem_need),
        )(ids, emb_table)

    return out[:total].reshape(B, S, d_model)


if __name__ == "__main__":
    # Small deterministic setup consistent with the module.
    d_model = 128
    vocab_size = 512
    B, S = 2, 8

    key = jax.random.PRNGKey(0)
    k_emb, k_ids = jax.random.split(key)

    # nn.Embedding weight ~ N(0, 1); deterministic init here. (bf16 tables are
    # also supported and halve HBM traffic; kept f32 to match nn.Embedding.)
    emb_table = jax.random.normal(k_emb, (vocab_size, d_model), dtype=jnp.float32)
    x = jax.random.randint(k_ids, (B, S), 0, vocab_size, dtype=jnp.int32)

    ref = emb_table[x] * math.sqrt(d_model)

    # Auto path (small table -> VMEM-resident one-hot matmul), single block.
    out_auto = jax.block_until_ready(input_embeddings(x, emb_table))
    # Multi-block resident path.
    out_res = jax.block_until_ready(
        input_embeddings(x, emb_table, block_tokens=8, force_path="resident"))
    # HBM-gather path (what a large-vocab table would use), multi-block.
    out_gat = jax.block_until_ready(
        input_embeddings(x, emb_table, block_tokens=8, force_path="gather"))

    for out in (out_auto, out_res, out_gat):
        assert out.shape == (B, S, d_model)
        assert jnp.allclose(out, ref, atol=1e-5, rtol=1e-5), \
            float(jnp.max(jnp.abs(out - ref)))

    print("KERNEL_OK")
</pallas_src>

<mosaic_0001>
module attributes {stable_mosaic.version = 11 : i64} {
  func.func @_resident_embed_kernel(%arg0: i32, %arg1: memref<16x1xi32, #tpu.memory_space<vmem>>, %arg2: memref<512x128xf32, #tpu.memory_space<vmem>>, %arg3: memref<16x128xf32, #tpu.memory_space<vmem>>) attributes {dimension_semantics = [#tpu.dimension_semantics<parallel>], iteration_bounds = array<i64: 1>, scalar_prefetch = 0 : i64, scratch_operands = 0 : i64, tpu.core_type = #tpu.core_type<tc>, window_params = [{transform_indices = @transform_0, window_bounds = array<i64: 16, 1>}, {pipeline_mode = #tpu.pipeline_mode<synchronous>, transform_indices = @transform_1, window_bounds = array<i64: 512, 128>}, {transform_indices = @transform_2, window_bounds = array<i64: 16, 128>}]} {
    %c0 = arith.constant 0 : index
    %c0_0 = arith.constant 0 : index
    %0 = vector.load %arg1[%c0, %c0_0] : memref<16x1xi32, #tpu.memory_space<vmem>>, vector<16x1xi32>
    %1 = tpu.iota {dimensions = array<i32: 1>} : vector<16x512xi32>
    %2 = vector.broadcast %0 : vector<16x1xi32> to vector<16x512xi32>
    %3 = arith.cmpi eq, %2, %1 : vector<16x512xi32>
    %4 = arith.extui %3 : vector<16x512xi1> to vector<16x512xi32>
    %5 = arith.sitofp %4 : vector<16x512xi32> to vector<16x512xf32>
    %c0_1 = arith.constant 0 : index
    %c0_2 = arith.constant 0 : index
    %6 = vector.load %arg2[%c0_1, %c0_2] : memref<512x128xf32, #tpu.memory_space<vmem>>, vector<512x128xf32>
    %cst = arith.constant dense<0.000000e+00> : vector<16x128xf32>
    %7 = tpu.matmul %5, %6, %cst {dimension_numbers = #tpu.dot_dimension_numbers<[1], [0], [0], [1], [0, 0, 1, 1], [], []>} : vector<16x512xf32>, vector<512x128xf32>, vector<16x128xf32> -> vector<16x128xf32>
    %cst_3 = arith.constant 11.3137083 : f32
    %8 = vector.broadcast %cst_3 : f32 to vector<16x128xf32>
    %9 = arith.mulf %7, %8 : vector<16x128xf32>
    %c0_4 = arith.constant 0 : index
    %c0_5 = arith.constant 0 : index
    %10 = vector.load %arg3[%c0_4, %c0_5] : memref<16x128xf32, #tpu.memory_space<vmem>>, vector<16x128xf32>
    tpu.vector_store %arg3[%c0_4, %c0_5], %9 {strides = array<i32>} : memref<16x128xf32, #tpu.memory_space<vmem>>, vector<16x128xf32>,
    return
  }
  func.func @transform_0(%arg0: i32) -> (i32, i32) {
    %c0_i32 = arith.constant 0 : i32
    %c0_i32_0 = arith.constant 0 : i32
    return %arg0, %c0_i32 : i32, i32
  }
  func.func @transform_1(%arg0: i32) -> (i32, i32) {
    %c0_i32 = arith.constant 0 : i32
    %c0_i32_0 = arith.constant 0 : i32
    %c0_i32_1 = arith.constant 0 : i32
    return %c0_i32, %c0_i32_0 : i32, i32
  }
  func.func @transform_2(%arg0: i32) -> (i32, i32) {
    %c0_i32 = arith.constant 0 : i32
    %c0_i32_0 = arith.constant 0 : i32
    return %arg0, %c0_i32 : i32, i32
  }
}

</mosaic_0001>

<llo_original>
// kernel: tpu_custom_call.1
$region0: #{tpu_custom_call.1}
  #allocation0 [shape = 'u32[]', space=smem, size = 0x4, offset = 0x4, fixed_abs, tag = 'smem constant byte address 0x4 - core index']
  #allocation1 [shape = 'u32[144,128]{1,0:T(1,128)}', space=vmem, size = 0x12000, scoped, tag = 'internal scratch']
  %s0 = inlined_call_operand.vmem [shape: s32[16,1], index: 0, kind: input, shape index: {}]
  %s1 = inlined_call_operand.hbm [shape: f32[512,128], index: 1, kind: input, shape index: {}]
  %s2 = inlined_call_operand.hbm [shape: f32[16,128], index: 2, kind: output, shape index: {}]
  %s3 = sld [smem:[#allocation0]]
  $region22: #{tpu_custom_call.1} parent=0
    _
  %s5 = ssub.s32 1, %s3
  %s6 = scalar_select 0, %s5, %s3
  $region1: #{tpu_custom_call.1} parent=0
    #allocation2 [shape = 'u8[262144]{0}', space=vmem, size = 0x40000, scoped, tag = 'input window, operand 1, single buffered']
    #allocation3 [shape = 's32[1]{0}', space=sflag, size = 0x4, scoped, tag = 'scoped memory for tpu_custom_call.1']
    #allocation4 [shape = 's32[1]{0}', space=sflag, size = 0x4, scoped, tag = 'scoped memory for tpu_custom_call.1']
    #allocation5 [shape = 'u8[8192]{0}', space=vmem, size = 0x2000, scoped, tag = 'output window, operand 0, single buffered']
    %7 = vsyncpa [#allocation3], 0
    %8 = vsyncpa [#allocation4], 0
    // Predicated region
    $region2: #{tpu_custom_call.1} parent=1 // pred_check
      _
    $region3: #{tpu_custom_call.1} parent=1 // pred_check_branch
      %10 = sbr.rel (0) target = $region5
    $region4: #{tpu_custom_call.1} parent=1 // pred_region
      _
    $region5: #{tpu_custom_call.1} parent=1 // pred_fallthru
      _
    // Predicated region
    $region6: #{tpu_custom_call.1} parent=1 // pred_check
      _
    $region7: #{tpu_custom_call.1} parent=1 // pred_check_branch
      %12 = sbr.rel (0) target = $region9
    $region8: #{tpu_custom_call.1} parent=1 // pred_region
      %s14 = ssub.s32 8192, 8192
      %15 = vsyncadd [#allocation3], %s14
      %s16 = sshll.u32 [#allocation2], 4
      %s17 = int_to_ptr.vmem [resolvable:$true] %s16
      %22 = dma.hbm_to_vmem [thread:$0]  %s1, 8192, %s17, [#allocation3], 128, 128, 8
    $region9: #{tpu_custom_call.1} parent=1 // pred_fallthru
      _
    // Predicated region
    $region10: #{tpu_custom_call.1} parent=1 // pred_check
      _
    $region11: #{tpu_custom_call.1} parent=1 // pred_check_branch
      %24 = sbr.rel (0) target = $region13
    $region12: #{tpu_custom_call.1} parent=1 // pred_region
      %25 = dma.done [#allocation3], 8192
    $region13: #{tpu_custom_call.1} parent=1 // pred_fallthru
      _
    %v26 = vld [vmem:[%s0] sm:$0xff]
    %v27 = vld [vmem:[%s0 + $0x8] sm:$0xff]
    %v28 = vlaneseq
    %v29 = vand.u32 %v28, 127
    %v30 = vadd.s32 %v29, 128
    %v31 = vadd.s32 %v29, 256
    %v32 = vadd.s32 %v29, 384
    %33 = vset.pattern.permute.xlu0 0
    %34 = vperm.xlu0 %33, %v26
    %v35 = vpop.permute.xlu0 %34
    %36 = vset.pattern.permute.xlu0 0
    %37 = vperm.xlu0 %36, %v27
    %v38 = vpop.permute.xlu0 %37
    %vm39 = vcmp.eq.s32.totalorder %v35, %v29
    %vm40 = vcmp.eq.s32.totalorder %v35, %v30
    %vm41 = vcmp.eq.s32.totalorder %v35, %v31
    %vm42 = vcmp.eq.s32.totalorder %v35, %v32
    %vm43 = vcmp.eq.s32.totalorder %v38, %v29
    %vm44 = vcmp.eq.s32.totalorder %v38, %v30
    %vm45 = vcmp.eq.s32.totalorder %v38, %v31
    %vm46 = vcmp.eq.s32.totalorder %v38, %v32
    %v47 = vsel %vm39, 1, 0
    %v48 = vsel %vm40, 1, 0
    %v49 = vsel %vm41, 1, 0
    %v50 = vsel %vm42, 1, 0
    %v51 = vsel %vm43, 1, 0
    %v52 = vsel %vm44, 1, 0
    %v53 = vsel %vm45, 1, 0
    %v54 = vsel %vm46, 1, 0
    %v55 = vcvt.s32.f32 %v47
    %v56 = vcvt.s32.f32 %v48
    %v57 = vcvt.s32.f32 %v49
    %v58 = vcvt.s32.f32 %v50
    %v59 = vcvt.s32.f32 %v51
    %v60 = vcvt.s32.f32 %v52
    %v61 = vcvt.s32.f32 %v53
    %v62 = vcvt.s32.f32 %v54
    %v63 = vld [vmem:[#allocation2] sm:$0xff]
    %v64 = vld [vmem:[#allocation2 + $0x8] sm:$0xff]
    %v65 = vld [vmem:[#allocation2 + $0x10] sm:$0xff]
    %v66 = vld [vmem:[#allocation2 + $0x18] sm:$0xff]
    %v67 = vld [vmem:[#allocation2 + $0x20] sm:$0xff]
    %v68 = vld [vmem:[#allocation2 + $0x28] sm:$0xff]
    %v69 = vld [vmem:[#allocation2 + $0x30] sm:$0xff]
    %v70 = vld [vmem:[#allocation2 + $0x38] sm:$0xff]
    %v71 = vld [vmem:[#allocation2 + $0x40] sm:$0xff]
    %v72 = vld [vmem:[#allocation2 + $0x48] sm:$0xff]
    %v73 = vld [vmem:[#allocation2 + $0x50] sm:$0xff]
    %v74 = vld [vmem:[#allocation2 + $0x58] sm:$0xff]
    %v75 = vld [vmem:[#allocation2 + $0x60] sm:$0xff]
    %v76 = vld [vmem:[#allocation2 + $0x68] sm:$0xff]
    %v77 = vld [vmem:[#allocation2 + $0x70] sm:$0xff]
    %v78 = vld [vmem:[#allocation2 + $0x78] sm:$0xff]
    %v79 = vld [vmem:[#allocation2 + $0x80] sm:$0xff]
    %v80 = vld [vmem:[#allocation2 + $0x88] sm:$0xff]
    %v81 = vld [vmem:[#allocation2 + $0x90] sm:$0xff]
    %v82 = vld [vmem:[#allocation2 + $0x98] sm:$0xff]
    %v83 = vld [vmem:[#allocation2 + $0xa0] sm:$0xff]
    %v84 = vld [vmem:[#allocation2 + $0xa8] sm:$0xff]
    %v85 = vld [vmem:[#allocation2 + $0xb0] sm:$0xff]
    %v86 = vld [vmem:[#allocation2 + $0xb8] sm:$0xff]
    %v87 = vld [vmem:[#allocation2 + $0xc0] sm:$0xff]
    %v88 = vld [vmem:[#allocation2 + $0xc8] sm:$0xff]
    %v89 = vld [vmem:[#allocation2 + $0xd0] sm:$0xff]
    %v90 = vld [vmem:[#allocation2 + $0xd8] sm:$0xff]
    %v91 = vld [vmem:[#allocation2 + $0xe0] sm:$0xff]
    %v92 = vld [vmem:[#allocation2 + $0xe8] sm:$0xff]
    %v93 = vld [vmem:[#allocation2 + $0xf0] sm:$0xff]
    %v94 = vld [vmem:[#allocation2 + $0xf8] sm:$0xff]
    %v95 = vld [vmem:[#allocation2 + $0x100] sm:$0xff]
    %v96 = vld [vmem:[#allocation2 + $0x108] sm:$0xff]
    %v97 = vld [vmem:[#allocation2 + $0x110] sm:$0xff]
    %v98 = vld [vmem:[#allocation2 + $0x118] sm:$0xff]
    %v99 = vld [vmem:[#allocation2 + $0x120] sm:$0xff]
    %v100 = vld [vmem:[#allocation2 + $0x128] sm:$0xff]
    %v101 = vld [vmem:[#allocation2 + $0x130] sm:$0xff]
    %v102 = vld [vmem:[#allocation2 + $0x138] sm:$0xff]
    %v103 = vld [vmem:[#allocation2 + $0x140] sm:$0xff]
    %v104 = vld [vmem:[#allocation2 + $0x148] sm:$0xff]
    %v105 = vld [vmem:[#allocation2 + $0x150] sm:$0xff]
    %v106 = vld [vmem:[#allocation2 + $0x158] sm:$0xff]
    %v107 = vld [vmem:[#allocation2 + $0x160] sm:$0xff]
    %v108 = vld [vmem:[#allocation2 + $0x168] sm:$0xff]
    %v109 = vld [vmem:[#allocation2 + $0x170] sm:$0xff]
    %v110 = vld [vmem:[#allocation2 + $0x178] sm:$0xff]
    %v111 = vld [vmem:[#allocation2 + $0x180] sm:$0xff]
    %v112 = vld [vmem:[#allocation2 + $0x188] sm:$0xff]
    %v113 = vld [vmem:[#allocation2 + $0x190] sm:$0xff]
    %v114 = vld [vmem:[#allocation2 + $0x198] sm:$0xff]
    %v115 = vld [vmem:[#allocation2 + $0x1a0] sm:$0xff]
    %v116 = vld [vmem:[#allocation2 + $0x1a8] sm:$0xff]
    %v117 = vld [vmem:[#allocation2 + $0x1b0] sm:$0xff]
    %v118 = vld [vmem:[#allocation2 + $0x1b8] sm:$0xff]
    %v119 = vld [vmem:[#allocation2 + $0x1c0] sm:$0xff]
    %v120 = vld [vmem:[#allocation2 + $0x1c8] sm:$0xff]
    %v121 = vld [vmem:[#allocation2 + $0x1d0] sm:$0xff]
    %v122 = vld [vmem:[#allocation2 + $0x1d8] sm:$0xff]
    %v123 = vld [vmem:[#allocation2 + $0x1e0] sm:$0xff]
    %v124 = vld [vmem:[#allocation2 + $0x1e8] sm:$0xff]
    %v125 = vld [vmem:[#allocation2 + $0x1f0] sm:$0xff]
    %v126 = vld [vmem:[#allocation2 + $0x1f8] sm:$0xff]
    %127 = vmatprep.subr.mxu0 0.0
    %128 = vmatpush1.msra.mxu0 %v78
    %129 = vmatprep.subr.mxu0 0.0
    %130 = vmatpush1.msra.mxu0 %v77
    %131 = vmatprep.subr.mxu0 0.0
    %132 = vmatpush1.msra.mxu0 %v76
    %133 = vmatprep.subr.mxu0 0.0
    %134 = vmatpush1.msra.mxu0 %v75
    %135 = vmatprep.subr.mxu0 0.0
    %136 = vmatpush1.msra.mxu0 %v74
    %137 = vmatprep.subr.mxu0 0.0
    %138 = vmatpush1.msra.mxu0 %v73
    %139 = vmatprep.subr.mxu0 0.0
    %140 = vmatpush1.msra.mxu0 %v72
    %141 = vmatprep.subr.mxu0 0.0
    %142 = vmatpush1.msra.mxu0 %v71
    %143 = vmatprep.subr.mxu0 0.0
    %144 = vmatpush1.msra.mxu0 %v70
    %145 = vmatprep.subr.mxu0 0.0
    %146 = vmatpush1.msra.mxu0 %v69
    %147 = vmatprep.subr.mxu0 0.0
    %148 = vmatpush1.msra.mxu0 %v68
    %149 = vmatprep.subr.mxu0 0.0
    %150 = vmatpush1.msra.mxu0 %v67
    %151 = vmatprep.subr.mxu0 0.0
    %152 = vmatpush1.msra.mxu0 %v66
    %153 = vmatprep.subr.mxu0 0.0
    %154 = vmatpush1.msra.mxu0 %v65
    %155 = vmatprep.subr.mxu0 0.0
    %156 = vmatpush1.msra.mxu0 %v64
    %157 = vmatprep.subr.mxu0 0.0
    %158 = vmatpush1.msra.mxu0 %v63
    %159 = vmatprep.subr.mxu0 0.0
    %160 = vmatpush2.msra.mxu0 %v94
    %161 = vmatprep.subr.mxu0 0.0
    %162 = vmatpush2.msra.mxu0 %v93
    %163 = vmatprep.subr.mxu0 0.0
    %164 = vmatpush2.msra.mxu0 %v92
    %165 = vmatprep.subr.mxu0 0.0
    %166 = vmatpush2.msra.mxu0 %v91
    %167 = vmatprep.subr.mxu0 0.0
    %168 = vmatpush2.msra.mxu0 %v90
    %169 = vmatprep.subr.mxu0 0.0
    %170 = vmatpush2.msra.mxu0 %v89
    %171 = vmatprep.subr.mxu0 0.0
    %172 = vmatpush2.msra.mxu0 %v88
    %173 = vmatprep.subr.mxu0 0.0
    %174 = vmatpush2.msra.mxu0 %v87
    %175 = vmatprep.subr.mxu0 0.0
    %176 = vmatpush2.msra.mxu0 %v86
    %177 = vmatprep.subr.mxu0 0.0
    %178 = vmatpush2.msra.mxu0 %v85
    %179 = vmatprep.subr.mxu0 0.0
    %180 = vmatpush2.msra.mxu0 %v84
    %181 = vmatprep.subr.mxu0 0.0
    %182 = vmatpush2.msra.mxu0 %v83
    %183 = vmatprep.subr.mxu0 0.0
    %184 = vmatpush2.msra.mxu0 %v82
    %185 = vmatprep.subr.mxu0 0.0
    %186 = vmatpush2.msra.mxu0 %v81
    %187 = vmatprep.subr.mxu0 0.0
    %188 = vmatpush2.msra.mxu0 %v80
    %189 = vmatprep.subr.mxu0 0.0
    %190 = vmatpush2.msra.mxu0 %v79
    %191 = vmatprep.mubr.f32.mxu0 %v56
    %192 = vmatmul.mubr.f32.gmra.mxu0 %v55
    %v193 = vpop.f32.mrf.mxu0
    %v194 = vadd.f32 0.0, %v193
    %v195 = vpop.f32.mrf.mxu0
    %196 = vmatprep.mubr.f32.mxu0 %v60
    %197 = vmatmul.mubr.f32.gmra.mxu0 %v59
    %v198 = vpop.f32.mrf.mxu0
    %v199 = vadd.f32 0.0, %v198
    %v200 = vpop.f32.mrf.mxu0
    %201 = vdwg.mxu0
    %202 = vmatprep.subr.mxu0 0.0
    %203 = vmatpush1.msra.mxu0 %v110
    %204 = vmatprep.subr.mxu0 0.0
    %205 = vmatpush1.msra.mxu0 %v109
    %206 = vmatprep.subr.mxu0 0.0
    %207 = vmatpush1.msra.mxu0 %v108
    %208 = vmatprep.subr.mxu0 0.0
    %209 = vmatpush1.msra.mxu0 %v107
    %210 = vmatprep.subr.mxu0 0.0
    %211 = vmatpush1.msra.mxu0 %v106
    %212 = vmatprep.subr.mxu0 0.0
    %213 = vmatpush1.msra.mxu0 %v105
    %214 = vmatprep.subr.mxu0 0.0
    %215 = vmatpush1.msra.mxu0 %v104
    %216 = vmatprep.subr.mxu0 0.0
    %217 = vmatpush1.msra.mxu0 %v103
    %218 = vmatprep.subr.mxu0 0.0
    %219 = vmatpush1.msra.mxu0 %v102
    %220 = vmatprep.subr.mxu0 0.0
    %221 = vmatpush1.msra.mxu0 %v101
    %222 = vmatprep.subr.mxu0 0.0
    %223 = vmatpush1.msra.mxu0 %v100
    %224 = vmatprep.subr.mxu0 0.0
    %225 = vmatpush1.msra.mxu0 %v99
    %226 = vmatprep.subr.mxu0 0.0
    %227 = vmatpush1.msra.mxu0 %v98
    %228 = vmatprep.subr.mxu0 0.0
    %229 = vmatpush1.msra.mxu0 %v97
    %230 = vmatprep.subr.mxu0 0.0
    %231 = vmatpush1.msra.mxu0 %v96
    %232 = vmatprep.subr.mxu0 0.0
    %233 = vmatpush1.msra.mxu0 %v95
    %234 = vmatprep.subr.mxu0 0.0
    %235 = vmatpush2.msra.mxu0 %v126
    %236 = vmatprep.subr.mxu0 0.0
    %237 = vmatpush2.msra.mxu0 %v125
    %238 = vmatprep.subr.mxu0 0.0
    %239 = vmatpush2.msra.mxu0 %v124
    %240 = vmatprep.subr.mxu0 0.0
    %241 = vmatpush2.msra.mxu0 %v123
    %242 = vmatprep.subr.mxu0 0.0
    %243 = vmatpush2.msra.mxu0 %v122
    %244 = vmatprep.subr.mxu0 0.0
    %245 = vmatpush2.msra.mxu0 %v121
    %246 = vmatprep.subr.mxu0 0.0
    %247 = vmatpush2.msra.mxu0 %v120
    %248 = vmatprep.subr.mxu0 0.0
    %249 = vmatpush2.msra.mxu0 %v119
    %250 = vmatprep.subr.mxu0 0.0
    %251 = vmatpush2.msra.mxu0 %v118
    %252 = vmatprep.subr.mxu0 0.0
    %253 = vmatpush2.msra.mxu0 %v117
    %254 = vmatprep.subr.mxu0 0.0
    %255 = vmatpush2.msra.mxu0 %v116
    %256 = vmatprep.subr.mxu0 0.0
    %257 = vmatpush2.msra.mxu0 %v115
    %258 = vmatprep.subr.mxu0 0.0
    %259 = vmatpush2.msra.mxu0 %v114
    %260 = vmatprep.subr.mxu0 0.0
    %261 = vmatpush2.msra.mxu0 %v113
    %262 = vmatprep.subr.mxu0 0.0
    %263 = vmatpush2.msra.mxu0 %v112
    %264 = vmatprep.subr.mxu0 0.0
    %265 = vmatpush2.msra.mxu0 %v111
    %266 = vmatprep.mubr.f32.mxu0 %v58
    %267 = vmatmul.mubr.f32.gmra.mxu0 %v57
    %v268 = vpop.f32.mrf.mxu0
    %v269 = vadd.f32 %v194, %v268
    %v270 = vpop.f32.mrf.mxu0
    %271 = vmatprep.mubr.f32.mxu0 %v62
    %272 = vmatmul.mubr.f32.gmra.mxu0 %v61
    %v273 = vpop.f32.mrf.mxu0
    %v274 = vadd.f32 %v199, %v273
    %v275 = vpop.f32.mrf.mxu0
    %276 = vdwg.mxu0
    %v277 = vmul.f32 %v269, 11.313708
    %v278 = vmul.f32 %v274, 11.313708
    %279 = vst [vmem:[#allocation5] sm:$0xff] %v277
    %280 = vst [vmem:[#allocation5 + $0x8] sm:$0xff] %v278
    // Predicated region
    $region14: #{tpu_custom_call.1} parent=1 // pred_check
      _
    $region15: #{tpu_custom_call.1} parent=1 // pred_check_branch
      %282 = sbr.rel (0) target = $region17
    $region16: #{tpu_custom_call.1} parent=1 // pred_region
      %s284 = ssub.s32 256, 256
      %285 = vsyncadd [#allocation4], %s284
      %s286 = sshll.u32 [#allocation5], 4
      %s287 = int_to_ptr.vmem [resolvable:$true] %s286
      %292 = dma.vmem_to_hbm [thread:$0]  %s287, 256, %s2, [#allocation4], 128, 128, 8
    $region17: #{tpu_custom_call.1} parent=1 // pred_fallthru
      _
    // Predicated region
    $region18: #{tpu_custom_call.1} parent=1 // pred_check
      _
    $region19: #{tpu_custom_call.1} parent=1 // pred_check_branch
      %294 = sbr.rel (0) target = $region21
    $region20: #{tpu_custom_call.1} parent=1 // pred_region
      %295 = dma.done [#allocation4], 256
    $region21: #{tpu_custom_call.1} parent=1 // pred_fallthru
      _
    %296 = vsyncpa [#allocation3], 1
    %297 = vsyncpa [#allocation4], 1

</llo_original>
